<compile_context>
chip_gen: v7x
topology: tpu7x:2x2x1
jax: 0.10.0
libtpu: 0.0.40
codegen_flags: <defaults>
</compile_context>

<pallas_src>
import functools

import jax
import jax.numpy as jnp
from jax.experimental import pallas as pl
from jax.experimental.pallas import tpu as pltpu

LANES = 128
ALPHA = 0.05  # module default


def _blur_bce(x, y, inv_alpha):
    """Elementwise alpha-blurred BCE-with-logits (f32 in, f32 out)."""
    # Stable BCE-with-logits: max(x,0) - x*y + log(1 + exp(-|x|))
    e = jnp.exp(-jnp.abs(x))                       # reused for the sigmoid
    loss = jnp.maximum(x, 0.0) - x * y + jnp.log1p(e)
    # Exact sigmoid reusing e: sigmoid(x) = where(x>=0, 1, e) / (1 + e)
    p = jnp.where(x >= 0.0, 1.0, e) / (1.0 + e)
    alpha_factor = 1.0 - jnp.exp((p - y - 1.0) * inv_alpha)
    return loss * alpha_factor


def _bce_blur_kernel(pred_ref, true_ref, out_ref, acc_ref, *,
                     inv_alpha, tm, lanes, valid_rows_last, has_partial):
    i = pl.program_id(1)                           # block index within this core
    is_last = i == pl.num_programs(1) - 1

    @pl.when(i == 0)
    def _():
        acc_ref[...] = jnp.zeros_like(acc_ref)

    x = pred_ref[0].astype(jnp.float32)            # (tm, lanes)
    y = true_ref[0].astype(jnp.float32)
    loss = _blur_bce(x, y, inv_alpha)

    if has_partial:
        # Only the (statically known) last block per core can contain garbage
        # rows from the partial DMA; mask them there, keep the steady state clean.
        @pl.when(jnp.logical_not(is_last))
        def _():
            acc_ref[...] += loss.reshape(tm // 8, 8, lanes).sum(axis=0)

        @pl.when(is_last)
        def _():
            r = jax.lax.broadcasted_iota(jnp.int32, (tm, lanes), 0)
            masked = jnp.where(r < valid_rows_last, loss, 0.0)
            acc_ref[...] += masked.reshape(tm // 8, 8, lanes).sum(axis=0)
    else:
        acc_ref[...] += loss.reshape(tm // 8, 8, lanes).sum(axis=0)

    @pl.when(is_last)
    def _():
        out_ref[...] = jnp.sum(acc_ref[...]).reshape(1, 1, 1)


def bce_blur_with_logits_loss(pred, true, alpha=ALPHA, tm=2048, n_cores=1,
                              core_parallel=False):
    """Mean alpha-blurred BCE-with-logits loss (YOLOv5 BCEBlurWithLogitsLoss).

    For v7x pass n_cores=2, core_parallel=True to shard across both TensorCores.
    """
    assert pred.shape == true.shape
    n = pred.size
    inv_alpha = 1.0 / (alpha + 1e-4)               # trace-time constant fold

    pred_flat = pred.reshape(-1)
    true_flat = true.reshape(-1)

    # Sublane multiple depends on the narrower input dtype (8 for 4B, 16 for 2B, 32 for 1B).
    itemsize = min(jnp.dtype(pred.dtype).itemsize, jnp.dtype(true.dtype).itemsize)
    sub = {4: 8, 2: 16, 1: 32}.get(itemsize, 8)

    align = n_cores * sub * LANES
    n_bulk = (n // align) * align                  # kernel handles this prefix
    tail = n - n_bulk                              # < align elems -> plain JAX

    total = jnp.zeros((), jnp.float32)

    if n_bulk > 0:
        pred_bulk = pred_flat if tail == 0 else pred_flat[:n_bulk]
        true_bulk = true_flat if tail == 0 else true_flat[:n_bulk]

        rows = n_bulk // LANES
        rows_per_core = rows // n_cores            # multiple of `sub`
        tm_r = max(sub, (tm // sub) * sub)         # sublane-aligned tile rows
        tm_eff = min(tm_r, rows_per_core)
        blocks_per_core = pl.cdiv(rows_per_core, tm_eff)
        valid_rows_last = rows_per_core - (blocks_per_core - 1) * tm_eff
        has_partial = valid_rows_last != tm_eff    # static Python bool

        pred3d = pred_bulk.reshape(n_cores, rows_per_core, LANES)
        true3d = true_bulk.reshape(n_cores, rows_per_core, LANES)

        kernel = functools.partial(
            _bce_blur_kernel,
            inv_alpha=inv_alpha, tm=tm_eff, lanes=LANES,
            valid_rows_last=valid_rows_last, has_partial=has_partial)

        bytes_accessed = n_bulk * (jnp.dtype(pred.dtype).itemsize +
                                   jnp.dtype(true.dtype).itemsize) + n_cores * 4
        cost = pl.CostEstimate(flops=12 * n_bulk, transcendentals=3 * n_bulk,
                               bytes_accessed=bytes_accessed)

        dim0 = (pltpu.CORE_PARALLEL if (core_parallel and n_cores > 1)
                else pltpu.PARALLEL)

        partials = pl.pallas_call(
            kernel,
            out_shape=jax.ShapeDtypeStruct((n_cores, 1, 1), jnp.float32),
            grid_spec=pltpu.PrefetchScalarGridSpec(
                num_scalar_prefetch=0,
                grid=(n_cores, blocks_per_core),
                in_specs=[
                    pl.BlockSpec((1, tm_eff, LANES), lambda c, i: (c, i, 0)),
                    pl.BlockSpec((1, tm_eff, LANES), lambda c, i: (c, i, 0)),
                ],
                out_specs=pl.BlockSpec((1, 1, 1), lambda c, i: (c, 0, 0)),
                scratch_shapes=[pltpu.VMEM((8, LANES), jnp.float32)],
            ),
            compiler_params=pltpu.CompilerParams(
                dimension_semantics=(dim0, pltpu.ARBITRARY),
                vmem_limit_bytes=32 * 1024 * 1024,
            ),
            cost_estimate=cost,
        )(pred3d, true3d)
        total = total + jnp.sum(partials)

    if tail > 0:
        # Ragged tail (< n_cores*sub*128 elements): negligible, plain JAX.
        xt = pred_flat[n_bulk:].astype(jnp.float32)
        yt = true_flat[n_bulk:].astype(jnp.float32)
        total = total + jnp.sum(_blur_bce(xt, yt, inv_alpha))

    return total / jnp.float32(n)


def _reference(pred, true, alpha=ALPHA):
    x = pred.astype(jnp.float32)
    y = true.astype(jnp.float32)
    loss = jnp.maximum(x, 0.0) - x * y + jnp.log1p(jnp.exp(-jnp.abs(x)))
    p = jax.nn.sigmoid(x)
    dx = p - y
    alpha_factor = 1.0 - jnp.exp((dx - 1.0) / (alpha + 1e-4))
    return jnp.mean(loss * alpha_factor)


if __name__ == "__main__":
    key = jax.random.PRNGKey(0)

    # (shape, dtype, tm, n_cores):
    #   1) aligned, default big tile         2) ragged JAX tail
    #   3) multi-block + masked partial blk  4) partial block AND tail AND 2-core grid
    #   5) bf16 passthrough (no wrapper upcast, 16-row sublane alignment)
    cases = [
        ((2, 4, 16, 16), jnp.float32, 2048, 1),
        ((2, 3, 16, 16), jnp.float32, 2048, 1),
        ((2, 8, 40, 40), jnp.float32, 64, 1),
        ((3, 5, 19, 23), jnp.float32, 16, 2),
        ((2, 4, 16, 16), jnp.bfloat16, 2048, 1),
    ]

    for idx, (shape, dtype, tm, n_cores) in enumerate(cases):
        k1, k2 = jax.random.split(jax.random.fold_in(key, idx))
        pred = jax.random.normal(k1, shape, dtype=jnp.float32).astype(dtype)
        true = (jax.random.uniform(k2, shape) > 0.7).astype(dtype)

        out = bce_blur_with_logits_loss(pred, true, tm=tm, n_cores=n_cores)
        out = jax.block_until_ready(out)

        ref = _reference(pred, true)
        assert jnp.allclose(out, ref, rtol=1e-5, atol=1e-6), (shape, dtype, out, ref)

    print("KERNEL_OK")
</pallas_src>

<mosaic_0001>
module attributes {stable_mosaic.version = 11 : i64} {
  func.func @_bce_blur_kernel(%arg0: i32, %arg1: i32, %arg2: memref<1x16x128xf32, #tpu.memory_space<vmem>>, %arg3: memref<1x16x128xf32, #tpu.memory_space<vmem>>, %arg4: memref<1x1x1xf32, #tpu.memory_space<vmem>>, %arg5: memref<8x128xf32, #tpu.memory_space<vmem>>) attributes {dimension_semantics = [#tpu.dimension_semantics<parallel>, #tpu.dimension_semantics<arbitrary>], iteration_bounds = array<i64: 1, 1>, scalar_prefetch = 0 : i64, scratch_operands = 1 : i64, tpu.core_type = #tpu.core_type<tc>, window_params = [{transform_indices = @transform_0, window_bounds = array<i64: 1, 16, 128>}, {transform_indices = @transform_1, window_bounds = array<i64: 1, 16, 128>}, {transform_indices = @transform_2, window_bounds = array<i64: 1, 1, 1>}]} {
    %c0_i32 = arith.constant 0 : i32
    %0 = arith.cmpi eq, %arg1, %c0_i32 : i32
    %c0_i32_0 = arith.constant 0 : i32
    %1 = arith.cmpi eq, %arg1, %c0_i32_0 : i32
    %2 = arith.extui %1 : i1 to i32
    %c0_i32_1 = arith.constant 0 : i32
    %3 = arith.cmpi ne, %2, %c0_i32_1 : i32
    scf.if %3 {
      %cst_20 = arith.constant 0.000000e+00 : f32
      %41 = vector.broadcast %cst_20 : f32 to vector<8x128xf32>
      %c0_21 = arith.constant 0 : index
      %c0_22 = arith.constant 0 : index
      %42 = vector.load %arg5[%c0_21, %c0_22] : memref<8x128xf32, #tpu.memory_space<vmem>>, vector<8x128xf32>
      tpu.vector_store %arg5[%c0_21, %c0_22], %41 {strides = array<i32>} : memref<8x128xf32, #tpu.memory_space<vmem>>, vector<8x128xf32>,
    } else {
    }
    %c0 = arith.constant 0 : index
    %c0_2 = arith.constant 0 : index
    %c0_3 = arith.constant 0 : index
    %4 = vector.load %arg2[%c0, %c0_2, %c0_3] : memref<1x16x128xf32, #tpu.memory_space<vmem>>, vector<1x16x128xf32>
    %5 = vector.shape_cast %4 : vector<1x16x128xf32> to vector<16x128xf32>
    %c0_4 = arith.constant 0 : index
    %c0_5 = arith.constant 0 : index
    %c0_6 = arith.constant 0 : index
    %6 = vector.load %arg3[%c0_4, %c0_5, %c0_6] : memref<1x16x128xf32, #tpu.memory_space<vmem>>, vector<1x16x128xf32>
    %7 = vector.shape_cast %6 : vector<1x16x128xf32> to vector<16x128xf32>
    %8 = math.absf %5 : vector<16x128xf32>
    %cst = arith.constant 0.000000e+00 : f32
    %9 = vector.broadcast %cst : f32 to vector<16x128xf32>
    %10 = arith.subf %9, %8 : vector<16x128xf32>
    %11 = math.exp %10 : vector<16x128xf32>
    %cst_7 = arith.constant 0.000000e+00 : f32
    %12 = vector.broadcast %cst_7 : f32 to vector<16x128xf32>
    %13 = arith.maximumf %5, %12 : vector<16x128xf32>
    %14 = arith.mulf %5, %7 : vector<16x128xf32>
    %15 = arith.subf %13, %14 : vector<16x128xf32>
    %16 = math.log1p %11 : vector<16x128xf32>
    %17 = arith.addf %15, %16 : vector<16x128xf32>
    %cst_8 = arith.constant 0.000000e+00 : f32
    %18 = vector.broadcast %cst_8 : f32 to vector<16x128xf32>
    %19 = arith.cmpf oge, %5, %18 : vector<16x128xf32>
    %cst_9 = arith.constant 1.000000e+00 : f32
    %20 = vector.broadcast %cst_9 : f32 to vector<16x128xf32>
    %21 = arith.select %19, %20, %11 : vector<16x128xi1>, vector<16x128xf32>
    %cst_10 = arith.constant 1.000000e+00 : f32
    %22 = vector.broadcast %cst_10 : f32 to vector<16x128xf32>
    %23 = arith.addf %22, %11 : vector<16x128xf32>
    %24 = arith.divf %21, %23 : vector<16x128xf32>
    %25 = arith.subf %24, %7 : vector<16x128xf32>
    %cst_11 = arith.constant 1.000000e+00 : f32
    %26 = vector.broadcast %cst_11 : f32 to vector<16x128xf32>
    %27 = arith.subf %25, %26 : vector<16x128xf32>
    %cst_12 = arith.constant 19.9600792 : f32
    %28 = vector.broadcast %cst_12 : f32 to vector<16x128xf32>
    %29 = arith.mulf %27, %28 : vector<16x128xf32>
    %30 = math.exp %29 : vector<16x128xf32>
    %cst_13 = arith.constant 1.000000e+00 : f32
    %31 = vector.broadcast %cst_13 : f32 to vector<16x128xf32>
    %32 = arith.subf %31, %30 : vector<16x128xf32>
    %33 = arith.mulf %17, %32 : vector<16x128xf32>
    %c0_14 = arith.constant 0 : index
    %c0_15 = arith.constant 0 : index
    %34 = vector.load %arg5[%c0_14, %c0_15] : memref<8x128xf32, #tpu.memory_space<vmem>>, vector<8x128xf32>
    %35 = vector.shape_cast %33 : vector<16x128xf32> to vector<2x8x128xf32>
    %cst_16 = arith.constant dense<0.000000e+00> : vector<8x128xf32>
    %36 = vector.multi_reduction <add>, %35, %cst_16 [0] : vector<2x8x128xf32> to vector<8x128xf32>
    %37 = arith.addf %34, %36 : vector<8x128xf32>
    %c0_17 = arith.constant 0 : index
    %c0_18 = arith.constant 0 : index
    %38 = vector.load %arg5[%c0_17, %c0_18] : memref<8x128xf32, #tpu.memory_space<vmem>>, vector<8x128xf32>
    tpu.vector_store %arg5[%c0_17, %c0_18], %37 {strides = array<i32>} : memref<8x128xf32, #tpu.memory_space<vmem>>, vector<8x128xf32>,
    %39 = arith.extui %0 : i1 to i32
    %c0_i32_19 = arith.constant 0 : i32
    %40 = arith.cmpi ne, %39, %c0_i32_19 : i32
    scf.if %40 {
      %c0_20 = arith.constant 0 : index
      %c0_21 = arith.constant 0 : index
      %41 = vector.load %arg5[%c0_20, %c0_21] : memref<8x128xf32, #tpu.memory_space<vmem>>, vector<8x128xf32>
      %42 = vector.shape_cast %41 : vector<8x128xf32> to vector<1x8x128xf32>
      %cst_22 = arith.constant dense<0.000000e+00> : vector<1xf32>
      %43 = vector.multi_reduction <add>, %42, %cst_22 [1, 2] : vector<1x8x128xf32> to vector<1xf32>
      %44 = vector.shape_cast %43 : vector<1xf32> to vector<1x1x1xf32>
      %45 = vector.extract %44[0, 0, 0] : f32 from vector<1x1x1xf32>
      %46 = vector.broadcast %45 : f32 to vector<1x1x1xf32>
      %c0_23 = arith.constant 0 : index
      %c0_24 = arith.constant 0 : index
      %c0_25 = arith.constant 0 : index
      %47 = vector.load %arg4[%c0_23, %c0_24, %c0_25] : memref<1x1x1xf32, #tpu.memory_space<vmem>>, vector<1x1x1xf32>
      tpu.vector_store %arg4[%c0_23, %c0_24, %c0_25], %46 {strides = array<i32>} : memref<1x1x1xf32, #tpu.memory_space<vmem>>, vector<1x1x1xf32>,
    } else {
    }
    return
  }
  func.func @transform_0(%arg0: i32, %arg1: i32) -> (i32, i32, i32) {
    %c0_i32 = arith.constant 0 : i32
    %c0_i32_0 = arith.constant 0 : i32
    return %arg0, %arg1, %c0_i32 : i32, i32, i32
  }
  func.func @transform_1(%arg0: i32, %arg1: i32) -> (i32, i32, i32) {
    %c0_i32 = arith.constant 0 : i32
    %c0_i32_0 = arith.constant 0 : i32
    return %arg0, %arg1, %c0_i32 : i32, i32, i32
  }
  func.func @transform_2(%arg0: i32, %arg1: i32) -> (i32, i32, i32) {
    %c0_i32 = arith.constant 0 : i32
    %c0_i32_0 = arith.constant 0 : i32
    %c0_i32_1 = arith.constant 0 : i32
    return %arg0, %c0_i32, %c0_i32_0 : i32, i32, i32
  }
}

</mosaic_0001>

<llo_original>
// kernel: tpu_custom_call.1
$region0: #{tpu_custom_call.1}
  #allocation0 [shape = 'u32[]', space=smem, size = 0x4, offset = 0x4, fixed_abs, tag = 'smem constant byte address 0x4 - core index']
  #allocation1 [shape = 'u32[144,128]{1,0:T(1,128)}', space=vmem, size = 0x12000, scoped, tag = 'internal scratch']
  #allocation2 [shape = 'f32[8,128]{1,0:T(8,128)}', space=vmem, size = 0x1000, scoped, tag = 'scratch operand']
  %s0 = inlined_call_operand.hbm [shape: f32[1,16,128], index: 0, kind: input, shape index: {}]
  %s1 = inlined_call_operand.hbm [shape: f32[1,16,128], index: 1, kind: input, shape index: {}]
  %s2 = inlined_call_operand.hbm [shape: f32[1,1,1], index: 2, kind: output, shape index: {}]
  %s3 = sld [smem:[#allocation0]]
  $region34: #{tpu_custom_call.1} parent=0
    _
  %s5 = ssub.s32 1, %s3
  %s6 = scalar_select 0, %s5, %s3
  $region1: #{tpu_custom_call.1} parent=0
    #allocation3 [shape = 'u8[8192]{0}', space=vmem, size = 0x2000, scoped, tag = 'input window, operand 0, single buffered']
    #allocation4 [shape = 's32[1]{0}', space=sflag, size = 0x4, scoped, tag = 'scoped memory for tpu_custom_call.1']
    #allocation5 [shape = 's32[1]{0}', space=sflag, size = 0x4, scoped, tag = 'scoped memory for tpu_custom_call.1']
    #allocation6 [shape = 'u8[8192]{0}', space=vmem, size = 0x2000, scoped, tag = 'input window, operand 1, single buffered']
    #allocation7 [shape = 's32[1]{0}', space=sflag, size = 0x4, scoped, tag = 'scoped memory for tpu_custom_call.1']
    #allocation8 [shape = 'u8[512]{0}', space=vmem, size = 0x400, scoped, tag = 'output window, operand 0, single buffered']
    %7 = vsyncpa [#allocation4], 0
    %8 = vsyncpa [#allocation7], 0
    %9 = vsyncpa [#allocation5], 0
    // Predicated region
    $region2: #{tpu_custom_call.1} parent=1 // pred_check
      _
    $region3: #{tpu_custom_call.1} parent=1 // pred_check_branch
      %11 = sbr.rel (0) target = $region5
    $region4: #{tpu_custom_call.1} parent=1 // pred_region
      %s13 = ssub.s32 256, 256
      %14 = vsyncadd [#allocation4], %s13
      %s15 = sshll.u32 [#allocation3], 4
      %s16 = int_to_ptr.vmem [resolvable:$true] %s15
      %21 = dma.hbm_to_vmem [thread:$0]  %s0, 256, %s16, [#allocation4], 128, 128, 8
    $region5: #{tpu_custom_call.1} parent=1 // pred_fallthru
      _
    // Predicated region
    $region6: #{tpu_custom_call.1} parent=1 // pred_check
      _
    $region7: #{tpu_custom_call.1} parent=1 // pred_check_branch
      %23 = sbr.rel (0) target = $region9
    $region8: #{tpu_custom_call.1} parent=1 // pred_region
      %s25 = ssub.s32 256, 256
      %26 = vsyncadd [#allocation7], %s25
      %s27 = sshll.u32 [#allocation6], 4
      %s28 = int_to_ptr.vmem [resolvable:$true] %s27
      %33 = dma.hbm_to_vmem [thread:$0]  %s1, 256, %s28, [#allocation7], 128, 128, 8
    $region9: #{tpu_custom_call.1} parent=1 // pred_fallthru
      _
    // Predicated region
    $region10: #{tpu_custom_call.1} parent=1 // pred_check
      _
    $region11: #{tpu_custom_call.1} parent=1 // pred_check_branch
      %35 = sbr.rel (0) target = $region13
    $region12: #{tpu_custom_call.1} parent=1 // pred_region
      %36 = dma.done [#allocation4], 256
    $region13: #{tpu_custom_call.1} parent=1 // pred_fallthru
      _
    // Predicated region
    $region14: #{tpu_custom_call.1} parent=1 // pred_check
      _
    $region15: #{tpu_custom_call.1} parent=1 // pred_check_branch
      %38 = sbr.rel (0) target = $region17
    $region16: #{tpu_custom_call.1} parent=1 // pred_region
      %39 = dma.done [#allocation7], 256
    $region17: #{tpu_custom_call.1} parent=1 // pred_fallthru
      _
    %p40 = scmp.eq.s32.totalorder 0, 0
    // Predicated region
    $region18: #{tpu_custom_call.1} parent=1 // pred_check
      %p41 = pneg %p40
    $region19: #{tpu_custom_call.1} parent=1 // pred_check_branch
      %43 = sbr.rel (%p41) target = $region21
    $region20: #{tpu_custom_call.1} parent=1 // pred_region
      %44 = vst [vmem:[#allocation2] sm:$0xff] 0.0
    $region21: #{tpu_custom_call.1} parent=1 // pred_fallthru
      _
    %v45 = vld [vmem:[#allocation3] sm:$0xff]
    %v46 = vld [vmem:[#allocation3 + $0x8] sm:$0xff]
    %v47 = vld [vmem:[#allocation6] sm:$0xff]
    %v48 = vld [vmem:[#allocation6 + $0x8] sm:$0xff]
    %v49 = vand.u32 2147483647, %v45
    %v50 = vand.u32 2147483647, %v46
    %v51 = vsub.f32 0.0, %v49
    %v52 = vsub.f32 0.0, %v50
    %v53 = vmul.f32 %v51, 1.442695
    %v54 = vpow.pop %v53
    %v55 = vmul.f32 %v52, 1.442695
    %v56 = vpow.pop %v55
    %v57 = vmax.f32 %v45, 0.0
    %v58 = vmax.f32 %v46, 0.0
    %v59 = vmul.f32 %v45, %v47
    %v60 = vmul.f32 %v46, %v48
    %v61 = vsub.f32 %v57, %v59
    %v62 = vsub.f32 %v58, %v60
    %v63 = vadd.f32 %v54, 1.0
    %v64 = vlog2.pop %v63
    %v65 = vmul.f32 %v64, 0.6931472
    %v66 = vmul.f32 -0.5, %v54
    %v67 = vadd.f32 %v66, 1.0
    %v68 = vmul.f32 %v67, %v54
    %v69 = vand.u32 2147483647, %v54
    %vm70 = vcmp.lt.f32.partialorder %v69, 0.0004427343
    %v71 = vsel %vm70, %v68, %v65
    %v72 = vadd.f32 %v56, 1.0
    %v73 = vlog2.pop %v72
    %v74 = vmul.f32 %v73, 0.6931472
    %v75 = vmul.f32 -0.5, %v56
    %v76 = vadd.f32 %v75, 1.0
    %v77 = vmul.f32 %v76, %v56
    %v78 = vand.u32 2147483647, %v56
    %vm79 = vcmp.lt.f32.partialorder %v78, 0.0004427343
    %v80 = vsel %vm79, %v77, %v74
    %v81 = vadd.f32 %v61, %v71
    %v82 = vadd.f32 %v62, %v80
    %vm83 = vcmp.ge.f32.partialorder %v45, 0.0
    %vm84 = vcmp.ge.f32.partialorder %v46, 0.0
    %v85 = vsel %vm83, 1.0, %v54
    %v86 = vsel %vm84, 1.0, %v56
    %v87 = vadd.f32 %v54, 1.0
    %v88 = vadd.f32 %v56, 1.0
    %v89 = vrcp.pop %v87
    %v90 = vmul.f32 %v85, %v89
    %v91 = vrcp.pop %v88
    %v92 = vmul.f32 %v86, %v91
    %v93 = vsub.f32 %v90, %v47
    %v94 = vsub.f32 %v92, %v48
    %v95 = vsub.f32 %v93, 1.0
    %v96 = vsub.f32 %v94, 1.0
    %v97 = vmul.f32 %v95, 19.96008
    %v98 = vmul.f32 %v96, 19.96008
    %v99 = vmul.f32 %v97, 1.442695
    %v100 = vpow.pop %v99
    %v101 = vmul.f32 %v98, 1.442695
    %v102 = vpow.pop %v101
    %v103 = vsub.f32 1.0, %v100
    %v104 = vsub.f32 1.0, %v102
    %v105 = vmul.f32 %v81, %v103
    %v106 = vmul.f32 %v82, %v104
    %v107 = vld [vmem:[#allocation2] sm:$0xff]
    %v108 = vadd.f32 %v105, %v106
    %v109 = vadd.f32 %v107, %v108
    %110 = vst [vmem:[#allocation2] sm:$0xff] %v109
    // Predicated region
    $region22: #{tpu_custom_call.1} parent=1 // pred_check
      %p111 = pneg %p40
    $region23: #{tpu_custom_call.1} parent=1 // pred_check_branch
      %113 = sbr.rel (%p111) target = $region25
    $region24: #{tpu_custom_call.1} parent=1 // pred_region
      %v114 = vld [vmem:[#allocation2] sm:$0xff]
      %115 = vadd.xlane.f32.xlu0 %v114
      %v116 = vpop.xlane.xlu0 %115
      %v117 = vrot.slane %v116, 4
      %v118 = vadd.f32 %v116, %v117
      %v119 = vrot.slane %v118, 2
      %v120 = vadd.f32 %v118, %v119
      %v121 = vrot.slane %v120, 1
      %v122 = vadd.f32 %v120, %v121
      %s123 = vtos %v122
      %v124 = vstv %s123
      %vm125 = vcmask 0
      %126 = vst.msk [vmem:[#allocation8] sm:$0x1] %vm125, %v124
    $region25: #{tpu_custom_call.1} parent=1 // pred_fallthru
      _
    // Predicated region
    $region26: #{tpu_custom_call.1} parent=1 // pred_check
      _
    $region27: #{tpu_custom_call.1} parent=1 // pred_check_branch
      %128 = sbr.rel (0) target = $region29
    $region28: #{tpu_custom_call.1} parent=1 // pred_region
      %s130 = ssub.s32 16, 16
      %131 = vsyncadd [#allocation5], %s130
      %s133 = sshll.u32 [#allocation8], 4
      %s134 = int_to_ptr.vmem [resolvable:$true] %s133
      %136 = dma.vmem_to_hbm [thread:$0]  %s134, 16, %s2, [#allocation5]
    $region29: #{tpu_custom_call.1} parent=1 // pred_fallthru
      _
    // Predicated region
    $region30: #{tpu_custom_call.1} parent=1 // pred_check
      _
    $region31: #{tpu_custom_call.1} parent=1 // pred_check_branch
      %138 = sbr.rel (0) target = $region33
    $region32: #{tpu_custom_call.1} parent=1 // pred_region
      %139 = dma.done [#allocation5], 16
    $region33: #{tpu_custom_call.1} parent=1 // pred_fallthru
      _
    %140 = vsyncpa [#allocation4], 1
    %141 = vsyncpa [#allocation7], 1
    %142 = vsyncpa [#allocation5], 1

</llo_original>
